<compile_context>
chip_gen: v6e
topology: v6e:2x2x1
jax: 0.10.0
libtpu: 0.0.40
codegen_flags: <defaults>
</compile_context>

<pallas_src>
import math
import functools

import jax
import jax.numpy as jnp
from jax import lax
from jax.experimental import pallas as pl
from jax.experimental.pallas import tpu as pltpu


# ----------------------------------------------------------------------------
# Parameter / buffer construction (plain JAX -- mirrors nn.Module __init__)
# ----------------------------------------------------------------------------
def make_positional_encoding_table(d_model: int, max_len: int = 4096) -> jnp.ndarray:
    """Builds the pe buffer of shape [max_len, 1, d_model], float32."""
    position = jnp.arange(max_len, dtype=jnp.float32)[:, None]                 # [L, 1]
    div_term = jnp.exp(jnp.arange(0, d_model, 2, dtype=jnp.float32)
                       * (-math.log(10000.0) / d_model))                       # [D/2]
    pe = jnp.zeros((max_len, d_model), dtype=jnp.float32)
    pe = pe.at[:, 0::2].set(jnp.sin(position * div_term))
    pe = pe.at[:, 1::2].set(jnp.cos(position * div_term))
    return pe[:, None, :]                                                      # [L, 1, D]


# ----------------------------------------------------------------------------
# Kernels (operate on folded 2-D tiles: x/out (ts, B*D), pe (ts, D))
# ----------------------------------------------------------------------------
def _broadcast_pe(pe_row, batch):
    # Replicate the (ts, D) pe block along lanes to (ts, B*D).
    # Column b*D + d of the folded x corresponds to pe[:, d], so a simple
    # lane-concat of B copies matches the folded layout exactly.
    if batch == 1:
        return pe_row
    return jnp.concatenate([pe_row] * batch, axis=-1)


def _pe_add_kernel(x_ref, pe_ref, o_ref, *, batch):
    # eval mode: y = x + pe[:seq_len]   (dropout is identity)
    pe_full = _broadcast_pe(pe_ref[...], batch)
    o_ref[...] = (x_ref[...] + pe_full).astype(o_ref.dtype)


def _lowbias32(x):
    # Well-known 32-bit integer avalanche hash ("lowbias32"); uint32 wraparound
    # arithmetic, runs on the VPU (and under interpret mode) -- no pltpu.prng_*.
    x = x ^ (x >> 16)
    x = x * jnp.uint32(0x7FEB352D)
    x = x ^ (x >> 15)
    x = x * jnp.uint32(0x846CA68B)
    x = x ^ (x >> 16)
    return x


def _pe_add_dropout_kernel(seed_ref, x_ref, pe_ref, o_ref, *, batch, tile_rows, p):
    # training mode: y = dropout(x + pe[:seq_len], p)
    pe_full = _broadcast_pe(pe_ref[...], batch)
    y = x_ref[...] + pe_full                                   # (ts, B*D)

    shape = y.shape
    rows = lax.broadcasted_iota(jnp.int32, shape, 0).astype(jnp.uint32)
    cols = lax.broadcasted_iota(jnp.int32, shape, 1).astype(jnp.uint32)
    row0 = pl.program_id(0).astype(jnp.uint32) * jnp.uint32(tile_rows)
    gid = (row0 + rows) * jnp.uint32(shape[1]) + cols          # global element id
    seed_u = seed_ref[0].astype(jnp.uint32)
    bits = _lowbias32(gid ^ (seed_u * jnp.uint32(0x9E3779B9)))

    # Integer-threshold mask: keep iff bits >= p * 2^32  (P[keep] = 1 - p).
    thresh = jnp.uint32(min(int(round(p * 4294967296.0)), 4294967295))
    keep = bits >= thresh
    scale = jnp.asarray(1.0 / (1.0 - p), dtype=y.dtype)
    o_ref[...] = jnp.where(keep, y * scale, jnp.zeros((), y.dtype)).astype(o_ref.dtype)


# ----------------------------------------------------------------------------
# Wrapper
# ----------------------------------------------------------------------------
def _pick_tile_rows(seq_len: int, row_bytes: int, target_bytes: int = 2 << 20) -> int:
    """Rows per tile: ~0.5-2 MiB per x tile, multiple of 8, and enough grid
    steps (>=8 when the sequence allows it) to enable pipelining."""
    if seq_len <= 8:
        return seq_len                      # block dim == full dim is allowed
    ts = max(8, target_bytes // max(row_bytes, 1))
    ts = max(8, (min(ts, seq_len) // 8) * 8)
    # Cap so the grid has >= ~8 steps when the sequence is long enough.
    cap = max(8, ((seq_len // 8) // 8) * 8)
    return min(ts, cap)


def positional_encoding_forward(x, pe, *, p: float = 0.1, training: bool = False,
                                seed: int = 0):
    """x: [S, B, D]; pe: [max_len, 1, D] (module buffer).  Returns [S, B, D]."""
    S, B, D = x.shape
    assert pe.shape[0] >= S and pe.shape[2] == D, "pe buffer too small / wrong width"

    dtype = x.dtype
    # Pass the *full* pe buffer (squeezed to 2-D, cast to x dtype); the
    # index_map only touches the first ceil(S/ts) blocks -- no pe[:S] round trip.
    pe2 = pe[:, 0, :].astype(dtype)                       # [max_len, D]
    x2 = x.reshape(S, B * D)                              # free row-major reshape

    BD = B * D
    ts = _pick_tile_rows(S, BD * dtype.itemsize)
    grid = (pl.cdiv(S, ts),)

    out_shape = jax.ShapeDtypeStruct((S, BD), dtype)
    cparams = pltpu.CompilerParams(
        dimension_semantics=("parallel",),                # megacore-shardable
        vmem_limit_bytes=32 * 1024 * 1024,                # safe on v5e/v6e/v7x
    )

    if (not training) or p == 0.0:
        y2 = pl.pallas_call(
            functools.partial(_pe_add_kernel, batch=B),
            grid=grid,
            in_specs=[pl.BlockSpec((ts, BD), lambda i: (i, 0)),
                      pl.BlockSpec((ts, D), lambda i: (i, 0))],
            out_specs=pl.BlockSpec((ts, BD), lambda i: (i, 0)),
            out_shape=out_shape,
            compiler_params=cparams,
        )(x2, pe2)
        return y2.reshape(S, B, D)

    # Training-mode dropout.  RNG stream intentionally differs from torch
    # (counter-based hash), but semantics -- Bernoulli keep(1-p), 1/(1-p) scale --
    # match the module.
    # TODO(synk): torch's exact dropout RNG stream is not reproducible here.
    seed_arr = jnp.array([seed], dtype=jnp.int32)
    grid_spec = pltpu.PrefetchScalarGridSpec(
        num_scalar_prefetch=1,
        grid=grid,
        in_specs=[pl.BlockSpec((ts, BD), lambda i, seed_ref: (i, 0)),
                  pl.BlockSpec((ts, D), lambda i, seed_ref: (i, 0))],
        out_specs=pl.BlockSpec((ts, BD), lambda i, seed_ref: (i, 0)),
    )
    y2 = pl.pallas_call(
        functools.partial(_pe_add_dropout_kernel, batch=B, tile_rows=ts, p=float(p)),
        grid_spec=grid_spec,
        out_shape=out_shape,
        compiler_params=cparams,
    )(seed_arr, x2, pe2)
    return y2.reshape(S, B, D)


# ----------------------------------------------------------------------------
# Demo / self-check
# ----------------------------------------------------------------------------
if __name__ == "__main__":
    d_model = 32
    max_len = 64          # small max_len for the demo (module default is 4096)
    seq_len = 8
    batch = 2

    key = jax.random.PRNGKey(0)
    x = jax.random.normal(key, (seq_len, batch, d_model), dtype=jnp.float32)
    pe = make_positional_encoding_table(d_model, max_len)

    # eval-mode forward (dropout = identity) -- deterministic, checkable
    y = positional_encoding_forward(x, pe, p=0.1, training=False)
    y = jax.block_until_ready(y)
    y_ref = x + pe[:seq_len]
    assert jnp.allclose(y, y_ref, atol=1e-6), "eval-path mismatch vs reference"

    # training-mode forward: every element must be either 0 (dropped) or
    # (x + pe) / (1 - p) (kept & rescaled)
    p = 0.1
    y_tr = positional_encoding_forward(x, pe, p=p, training=True, seed=1234)
    y_tr = jax.block_until_ready(y_tr)
    assert y_tr.shape == x.shape
    scaled = y_ref / (1.0 - p)
    ok = jnp.isclose(y_tr, 0.0, atol=1e-6) | jnp.isclose(y_tr, scaled, rtol=1e-5, atol=1e-5)
    assert bool(jnp.all(ok)), "training-path values not in {0, (x+pe)/(1-p)}"

    print("KERNEL_OK")
</pallas_src>

<mosaic_0001>
module attributes {stable_mosaic.version = 11 : i64} {
  func.func @_pe_add_kernel(%arg0: i32, %arg1: memref<8x64xf32, #tpu.memory_space<vmem>>, %arg2: memref<8x32xf32, #tpu.memory_space<vmem>>, %arg3: memref<8x64xf32, #tpu.memory_space<vmem>>) attributes {dimension_semantics = [#tpu.dimension_semantics<parallel>], iteration_bounds = array<i64: 1>, scalar_prefetch = 0 : i64, scratch_operands = 0 : i64, tpu.core_type = #tpu.core_type<tc>, window_params = [{transform_indices = @transform_0, window_bounds = array<i64: 8, 64>}, {transform_indices = @transform_1, window_bounds = array<i64: 8, 32>}, {transform_indices = @transform_2, window_bounds = array<i64: 8, 64>}]} {
    %c0 = arith.constant 0 : index
    %c0_0 = arith.constant 0 : index
    %0 = vector.load %arg2[%c0, %c0_0] : memref<8x32xf32, #tpu.memory_space<vmem>>, vector<8x32xf32>
    %1 = tpu.concatenate %0, %0 in 1 : vector<8x32xf32>, vector<8x32xf32> -> vector<8x64xf32>
    %c0_1 = arith.constant 0 : index
    %c0_2 = arith.constant 0 : index
    %2 = vector.load %arg1[%c0_1, %c0_2] : memref<8x64xf32, #tpu.memory_space<vmem>>, vector<8x64xf32>
    %3 = arith.addf %2, %1 : vector<8x64xf32>
    %c0_3 = arith.constant 0 : index
    %c0_4 = arith.constant 0 : index
    %4 = vector.load %arg3[%c0_3, %c0_4] : memref<8x64xf32, #tpu.memory_space<vmem>>, vector<8x64xf32>
    tpu.vector_store %arg3[%c0_3, %c0_4], %3 {strides = array<i32>} : memref<8x64xf32, #tpu.memory_space<vmem>>, vector<8x64xf32>,
    return
  }
  func.func @transform_0(%arg0: i32) -> (i32, i32) {
    %c0_i32 = arith.constant 0 : i32
    %c0_i32_0 = arith.constant 0 : i32
    return %arg0, %c0_i32 : i32, i32
  }
  func.func @transform_1(%arg0: i32) -> (i32, i32) {
    %c0_i32 = arith.constant 0 : i32
    %c0_i32_0 = arith.constant 0 : i32
    return %arg0, %c0_i32 : i32, i32
  }
  func.func @transform_2(%arg0: i32) -> (i32, i32) {
    %c0_i32 = arith.constant 0 : i32
    %c0_i32_0 = arith.constant 0 : i32
    return %arg0, %c0_i32 : i32, i32
  }
}

</mosaic_0001>

<llo_original>
// kernel: tpu_custom_call.1
$region0: #{tpu_custom_call.1}
  #allocation0 [shape = 'u32[]', space=smem, size = 0x4, offset = 0x4, fixed_abs, tag = 'smem constant byte address 0x4 - core index']
  #allocation1 [shape = 'u32[144,128]{1,0:T(1,128)}', space=vmem, size = 0x12000, scoped, tag = 'internal scratch']
  %s0 = inlined_call_operand.vmem [shape: f32[8,64], index: 0, kind: input, shape index: {}]
  %s1 = inlined_call_operand.vmem [shape: f32[64,32], index: 1, kind: input, shape index: {}]
  %s2 = inlined_call_operand.hbm [shape: f32[8,64], index: 2, kind: output, shape index: {}]
  %s3 = sld [smem:[#allocation0]]
  $region18: #{tpu_custom_call.1} parent=0
    _
  %s5 = ssub.s32 1, %s3
  %s6 = scalar_select 0, %s5, %s3
  $region1: #{tpu_custom_call.1} parent=0
    #allocation2 [shape = 'u8[4096]{0}', space=vmem, size = 0x1000, scoped, tag = 'output window, operand 0, single buffered']
    #allocation3 [shape = 's32[1]{0}', space=sflag, size = 0x4, scoped, tag = 'scoped memory for tpu_custom_call.1']
    %7 = vsyncpa [#allocation3], 0
    // Predicated region
    $region2: #{tpu_custom_call.1} parent=1 // pred_check
      _
    $region3: #{tpu_custom_call.1} parent=1 // pred_check_branch
      %9 = sbr.rel (0) target = $region5
    $region4: #{tpu_custom_call.1} parent=1 // pred_region
      _
    $region5: #{tpu_custom_call.1} parent=1 // pred_fallthru
      _
    // Predicated region
    $region6: #{tpu_custom_call.1} parent=1 // pred_check
      _
    $region7: #{tpu_custom_call.1} parent=1 // pred_check_branch
      %11 = sbr.rel (0) target = $region9
    $region8: #{tpu_custom_call.1} parent=1 // pred_region
      _
    $region9: #{tpu_custom_call.1} parent=1 // pred_fallthru
      _
    %v12 = vld [vmem:[%s1] sm:$0xff]
    %14 = vrot.lane.b32.xlu0 %v12, 32
    %v15 = vpop.permute.xlu0 %14
    %vm17 = vcmask 261120
    %v18 = vsel %vm17, %v12, %v15
    %v19 = vld [vmem:[%s0] sm:$0xff]
    %v20 = vadd.f32 %v19, %v18
    %vm21 = vcmask 523264
    %22 = vst.msk [vmem:[#allocation2] sm:$0xff] %vm21, %v20
    // Predicated region
    $region10: #{tpu_custom_call.1} parent=1 // pred_check
      _
    $region11: #{tpu_custom_call.1} parent=1 // pred_check_branch
      %24 = sbr.rel (0) target = $region13
    $region12: #{tpu_custom_call.1} parent=1 // pred_region
      %s26 = ssub.s32 128, 128
      %27 = vsyncadd [#allocation3], %s26
      %s29 = sshll.u32 [#allocation2], 4
      %s30 = int_to_ptr.vmem [resolvable:$true] %s29
      %32 = dma.vmem_to_hbm [thread:$0]  %s30, 128, %s2, [#allocation3]
    $region13: #{tpu_custom_call.1} parent=1 // pred_fallthru
      _
    // Predicated region
    $region14: #{tpu_custom_call.1} parent=1 // pred_check
      _
    $region15: #{tpu_custom_call.1} parent=1 // pred_check_branch
      %34 = sbr.rel (0) target = $region17
    $region16: #{tpu_custom_call.1} parent=1 // pred_region
      %35 = dma.done [#allocation3], 128
    $region17: #{tpu_custom_call.1} parent=1 // pred_fallthru
      _
    %36 = vsyncpa [#allocation3], 1

</llo_original>
